<compile_context>
chip_gen: v7x
topology: tpu7x:2x2x1
jax: 0.10.0
libtpu: 0.0.40
codegen_flags: <defaults>
</compile_context>

<pallas_src>
import functools
import math

import jax
import jax.numpy as jnp
from jax import lax
from jax.experimental import pallas as pl
from jax.experimental.pallas import tpu as pltpu

_BN_EPS = 1e-5        # BatchNorm1d eps
_NORM_EPS = 1e-12     # F.normalize default eps

CLASS_TILE = 512      # lane-dense ArcFace output tile (adaptive for few classes)


def _pick_spatial_tile(hw):
    """Largest lane-aligned tile (<=2048) that divides H*W; else mask the tail."""
    for t in (2048, 1024, 512, 256, 128):
        if hw % t == 0:
            return t
    return 512 if hw >= 512 else 128


def _vmem_limit_bytes():
    """Per-generation scoped-VMEM budget (v7x has 64 MiB, v5e/v6e 128 MiB)."""
    cap = 128 * 1024 * 1024
    try:
        cap = int(pltpu.get_tpu_info().vmem_capacity_bytes)
    except Exception:
        pass
    return min(int(cap * 3 // 4), 96 * 1024 * 1024)


def _feature_kernel(x_ref, wt_ref, b_ref, bsum_ref, feat_ref, acc_ref, *,
                    hw, tile):
    """Streamed GAP over flattened (B*C, HW) rows + fused head/normalize.

    Grid = (batch_half [parallel], spatial_tile [arbitrary/reduction]).
    """
    s = pl.program_id(1)

    @pl.when(s == 0)
    def _init():
        acc_ref[...] = jnp.zeros_like(acc_ref)

    chunk = x_ref[...]                                   # (rows_pb, tile) f32
    if hw % tile:                                        # static: ragged tail only
        col = s * tile + lax.broadcasted_iota(jnp.int32, chunk.shape, 1)
        chunk = jnp.where(col < hw, chunk, 0.0)
    acc_ref[...] += chunk                                # pure VPU in steady state

    @pl.when(s == pl.num_programs(1) - 1)
    def _finalize():
        # Single cross-lane reduce: per-row spatial sums (rows_pb, 1).
        sums = jnp.sum(acc_ref[...], axis=-1, keepdims=True)
        # Segment-sum matmul regroups (B*C) rows into batches and applies the
        # folded conv-head/classifier/BN map in one shot (1/HW folded into wt).
        h = jnp.dot(bsum_ref[...], sums * wt_ref[...],
                    preferred_element_type=jnp.float32) + b_ref[...]
        # Dropout(p=0.2) is identity in eval mode.
        # F.normalize: x / max(||x||, eps) == x * rsqrt(max(||x||^2, eps^2)).
        ss = jnp.sum(h * h, axis=-1, keepdims=True)
        xn = h * lax.rsqrt(jnp.maximum(ss, _NORM_EPS * _NORM_EPS))
        feat_ref[...] = xn.astype(feat_ref.dtype)        # bf16 embeddings


def _arcface_kernel(xn_ref, wn_ref, out_ref):
    """Cosine logits for one lane-dense class tile (bf16 in, f32 accumulate)."""
    out_ref[...] = jnp.dot(xn_ref[...], wn_ref[...],
                           preferred_element_type=jnp.float32)


def prepare_params(raw, class_tile=CLASS_TILE):
    """Static per-call hoists: BN fold, head collapse, ArcFace W normalization."""
    # BatchNorm1d (eval) fold using running statistics.
    scale = raw["bn_gamma"] / jnp.sqrt(raw["bn_var"] + _BN_EPS)          # (D,)
    clf_w_f = raw["clf_w"].T * scale[None, :]                            # (F_in, D)
    clf_b_f = (raw["clf_b"] - raw["bn_mean"]) * scale + raw["bn_beta"]   # (D,)

    # Collapse the (linear, eval-mode) 1x1 conv head + classifier + BN into a
    # single (C, D) affine map applied to the pooled channels.
    head_w = raw["conv_w"].T @ clf_w_f                                   # (C, D)
    head_b = (raw["conv_b"] @ clf_w_f + clf_b_f).reshape(1, -1)          # (1, D)

    # ArcFace: row-normalize once in f32, transpose to (D, n_cls), zero-pad the
    # class dim to the lane-dense tile, store bf16 (halves kernel-2 HBM bytes).
    arc_w = raw["arc_w"]                                                 # (n_cls, D)
    wnorm = jnp.sqrt(jnp.sum(arc_w * arc_w, axis=1, keepdims=True))
    wn_t = (arc_w / jnp.maximum(wnorm, _NORM_EPS)).T                     # (D, n_cls)
    n_cls = wn_t.shape[1]
    ct = min(class_tile, pl.cdiv(n_cls, 128) * 128)
    n_cls_pad = pl.cdiv(n_cls, ct) * ct
    wn_t = jnp.pad(wn_t, ((0, 0), (0, n_cls_pad - n_cls))).astype(jnp.bfloat16)

    return {"head_w": head_w, "head_b": head_b, "arc_wn_t": wn_t,
            "n_cls": n_cls, "class_tile": ct}


def shopee_forward(img, prepped):
    """img: (B, C, H, W) float32 NCHW. Returns (B, out_features) cosine logits."""
    B, C, H, W = img.shape
    HW = H * W
    tile = _pick_spatial_tile(HW)
    n_sp = pl.cdiv(HW, tile)

    rows = B * C
    # v7x: split batch halves over a "parallel" axis so both TCs stream half
    # the image each (only when the halves stay sublane-aligned).
    nb = 2 if (B % 16 == 0) else 1
    rows_pb = rows // nb
    b_pb = B // nb

    # Free collapsing reshape of the contiguous NCHW buffer; streamed as f32.
    x2 = img.reshape(rows, HW)

    head_w = prepped["head_w"]                           # (C, D)
    head_b = prepped["head_b"]                           # (1, D)
    D = head_w.shape[1]

    # Static per-call hoists: per-row head weights (1/HW folded in) and the
    # 0/1 batch-segment matrix that replaces the (B*C,1)->(B,C) reshape.
    wt = jnp.tile(head_w, (B, 1)) * (1.0 / HW)                           # (rows, D)
    bsum = (jnp.arange(rows, dtype=jnp.int32)[None, :] // C
            == jnp.arange(B, dtype=jnp.int32)[:, None]).astype(jnp.float32)

    vmem_limit = _vmem_limit_bytes()

    # ---- Kernel 1: pipelined GAP stream + fused head -> bf16 L2-normalized
    # embeddings.  Weight-side inputs are tiny ((C,D) collapsed map), so their
    # double buffering is negligible VMEM.
    xn = pl.pallas_call(
        functools.partial(_feature_kernel, hw=HW, tile=tile),
        out_shape=jax.ShapeDtypeStruct((B, D), jnp.bfloat16),
        grid=(nb, n_sp),
        in_specs=[
            pl.BlockSpec((rows_pb, tile), lambda r, s: (r, s)),
            pl.BlockSpec((rows_pb, D), lambda r, s: (r, 0)),
            pl.BlockSpec((1, D), lambda r, s: (0, 0)),
            pl.BlockSpec((b_pb, rows_pb), lambda r, s: (r, r)),
        ],
        out_specs=pl.BlockSpec((b_pb, D), lambda r, s: (r, 0)),
        scratch_shapes=[pltpu.VMEM((rows_pb, tile), jnp.float32)],
        compiler_params=pltpu.CompilerParams(
            dimension_semantics=("parallel", "arbitrary"),
            vmem_limit_bytes=vmem_limit),
    )(x2, wt, head_b, bsum)

    # ---- Kernel 2: class-tiled, lane-dense ArcFace cosine matmul (bf16 stream,
    # f32 accumulation, "parallel" class axis for megacore sharding).
    wn_t = prepped["arc_wn_t"]                           # (D, n_cls_pad) bf16
    n_cls_pad = wn_t.shape[1]
    ct = prepped["class_tile"]
    n_ct = n_cls_pad // ct

    logits_pad = pl.pallas_call(
        _arcface_kernel,
        out_shape=jax.ShapeDtypeStruct((B, n_cls_pad), jnp.float32),
        grid=(n_ct,),
        in_specs=[
            pl.BlockSpec((B, D), lambda j: (0, 0)),
            pl.BlockSpec((D, ct), lambda j: (0, j)),
        ],
        out_specs=pl.BlockSpec((B, ct), lambda j: (0, j)),
        compiler_params=pltpu.CompilerParams(
            dimension_semantics=("parallel",),
            vmem_limit_bytes=vmem_limit),
    )(xn, wn_t)

    # Eval-path ArcFace (label=None) returns raw cosine similarities (no scale).
    return logits_pad[:, :prepped["n_cls"]]


def init_params(key, c_in, in_features, feature_space, out_features):
    """Raw (torch-layout) parameters matching the module's initializers."""
    k1, k2, k3 = jax.random.split(key, 3)

    def xavier_uniform(k, fan_in, fan_out, shape):
        limit = math.sqrt(6.0 / (fan_in + fan_out))
        return jax.random.uniform(k, shape, jnp.float32, -limit, limit)

    def xavier_normal(k, fan_in, fan_out, shape):
        std = math.sqrt(2.0 / (fan_in + fan_out))
        return std * jax.random.normal(k, shape, jnp.float32)

    return {
        # stand-in 1x1 conv head (out_ch, in_ch)
        "conv_w": xavier_uniform(k1, c_in, in_features, (in_features, c_in)),
        "conv_b": jnp.zeros((in_features,), jnp.float32),
        # classifier Linear: xavier_normal_, bias 0 (per _init_params)
        "clf_w": xavier_normal(k2, in_features, feature_space,
                               (feature_space, in_features)),
        "clf_b": jnp.zeros((feature_space,), jnp.float32),
        # BatchNorm1d: affine weight 1 / bias 0, fresh running stats
        "bn_gamma": jnp.ones((feature_space,), jnp.float32),
        "bn_beta": jnp.zeros((feature_space,), jnp.float32),
        "bn_mean": jnp.zeros((feature_space,), jnp.float32),
        "bn_var": jnp.ones((feature_space,), jnp.float32),
        # ArcFace weight: xavier_uniform_, (out_features, feature_space)
        "arc_w": xavier_uniform(k3, feature_space, out_features,
                                (out_features, feature_space)),
    }


if __name__ == "__main__":
    # Small shapes consistent with the module's forward (NCHW input).
    B, C, H, W = 2, 4, 16, 16
    IN_FEATURES = 32        # backbone conv-head channels
    FEATURE_SPACE = 32      # embedding dim
    OUT_FEATURES = 16       # number of classes

    key = jax.random.PRNGKey(0)
    k_img, k_params = jax.random.split(key)

    img = jax.random.normal(k_img, (B, C, H, W), jnp.float32)
    raw = init_params(k_params, C, IN_FEATURES, FEATURE_SPACE, OUT_FEATURES)
    prepped = prepare_params(raw)

    logits = shopee_forward(img, prepped)
    jax.block_until_ready(logits)

    assert logits.shape == (B, OUT_FEATURES)
    assert bool(jnp.all(jnp.isfinite(logits)))
    # eval-path ArcFace returns raw cosine similarities in [-1, 1]
    # (bf16 inputs, f32 accumulation -> allow a small tolerance)
    assert bool(jnp.all(jnp.abs(logits) <= 1.0 + 1e-2))
    print("KERNEL_OK")
</pallas_src>

<mosaic_0001>
module attributes {stable_mosaic.version = 11 : i64} {
  func.func @_feature_kernel(%arg0: i32, %arg1: i32, %arg2: memref<8x256xf32, #tpu.memory_space<vmem>>, %arg3: memref<8x32xf32, #tpu.memory_space<vmem>>, %arg4: memref<1x32xf32, #tpu.memory_space<vmem>>, %arg5: memref<2x8xf32, #tpu.memory_space<vmem>>, %arg6: memref<2x32xbf16, #tpu.memory_space<vmem>>, %arg7: memref<8x256xf32, #tpu.memory_space<vmem>>) attributes {dimension_semantics = [#tpu.dimension_semantics<parallel>, #tpu.dimension_semantics<arbitrary>], iteration_bounds = array<i64: 1, 1>, scalar_prefetch = 0 : i64, scratch_operands = 1 : i64, tpu.core_type = #tpu.core_type<tc>, window_params = [{transform_indices = @transform_0, window_bounds = array<i64: 8, 256>}, {transform_indices = @transform_1, window_bounds = array<i64: 8, 32>}, {pipeline_mode = #tpu.pipeline_mode<synchronous>, transform_indices = @transform_2, window_bounds = array<i64: 1, 32>}, {transform_indices = @transform_3, window_bounds = array<i64: 2, 8>}, {transform_indices = @transform_4, window_bounds = array<i64: 2, 32>}]} {
    %c0_i32 = arith.constant 0 : i32
    %0 = arith.cmpi eq, %arg1, %c0_i32 : i32
    %1 = arith.extui %0 : i1 to i32
    %c0_i32_0 = arith.constant 0 : i32
    %2 = arith.cmpi ne, %1, %c0_i32_0 : i32
    scf.if %2 {
      %cst = arith.constant 0.000000e+00 : f32
      %10 = vector.broadcast %cst : f32 to vector<8x256xf32>
      %c0_8 = arith.constant 0 : index
      %c0_9 = arith.constant 0 : index
      %11 = vector.load %arg7[%c0_8, %c0_9] : memref<8x256xf32, #tpu.memory_space<vmem>>, vector<8x256xf32>
      tpu.vector_store %arg7[%c0_8, %c0_9], %10 {strides = array<i32>} : memref<8x256xf32, #tpu.memory_space<vmem>>, vector<8x256xf32>,
    } else {
    }
    %c0 = arith.constant 0 : index
    %c0_1 = arith.constant 0 : index
    %3 = vector.load %arg2[%c0, %c0_1] : memref<8x256xf32, #tpu.memory_space<vmem>>, vector<8x256xf32>
    %c0_2 = arith.constant 0 : index
    %c0_3 = arith.constant 0 : index
    %4 = vector.load %arg7[%c0_2, %c0_3] : memref<8x256xf32, #tpu.memory_space<vmem>>, vector<8x256xf32>
    %5 = arith.addf %4, %3 : vector<8x256xf32>
    %c0_4 = arith.constant 0 : index
    %c0_5 = arith.constant 0 : index
    %6 = vector.load %arg7[%c0_4, %c0_5] : memref<8x256xf32, #tpu.memory_space<vmem>>, vector<8x256xf32>
    tpu.vector_store %arg7[%c0_4, %c0_5], %5 {strides = array<i32>} : memref<8x256xf32, #tpu.memory_space<vmem>>, vector<8x256xf32>,
    %c0_i32_6 = arith.constant 0 : i32
    %7 = arith.cmpi eq, %arg1, %c0_i32_6 : i32
    %8 = arith.extui %7 : i1 to i32
    %c0_i32_7 = arith.constant 0 : i32
    %9 = arith.cmpi ne, %8, %c0_i32_7 : i32
    scf.if %9 {
      %c0_8 = arith.constant 0 : index
      %c0_9 = arith.constant 0 : index
      %10 = vector.load %arg7[%c0_8, %c0_9] : memref<8x256xf32, #tpu.memory_space<vmem>>, vector<8x256xf32>
      %cst = arith.constant dense<0.000000e+00> : vector<8xf32>
      %11 = vector.multi_reduction <add>, %10, %cst [1] : vector<8x256xf32> to vector<8xf32>
      %12 = vector.shape_cast %11 : vector<8xf32> to vector<8x1xf32>
      %c0_10 = arith.constant 0 : index
      %c0_11 = arith.constant 0 : index
      %13 = vector.load %arg5[%c0_10, %c0_11] : memref<2x8xf32, #tpu.memory_space<vmem>>, vector<2x8xf32>
      %c0_12 = arith.constant 0 : index
      %c0_13 = arith.constant 0 : index
      %14 = vector.load %arg3[%c0_12, %c0_13] : memref<8x32xf32, #tpu.memory_space<vmem>>, vector<8x32xf32>
      %15 = vector.broadcast %12 : vector<8x1xf32> to vector<8x32xf32>
      %16 = arith.mulf %15, %14 : vector<8x32xf32>
      %cst_14 = arith.constant dense<0.000000e+00> : vector<2x32xf32>
      %17 = tpu.matmul %13, %16, %cst_14 {dimension_numbers = #tpu.dot_dimension_numbers<[1], [0], [0], [1], [0, 0, 1, 1], [], []>} : vector<2x8xf32>, vector<8x32xf32>, vector<2x32xf32> -> vector<2x32xf32>
      %c0_15 = arith.constant 0 : index
      %c0_16 = arith.constant 0 : index
      %18 = vector.load %arg4[%c0_15, %c0_16] : memref<1x32xf32, #tpu.memory_space<vmem>>, vector<1x32xf32>
      %19 = vector.broadcast %18 : vector<1x32xf32> to vector<2x32xf32>
      %20 = arith.addf %17, %19 : vector<2x32xf32>
      %21 = arith.mulf %20, %20 : vector<2x32xf32>
      %cst_17 = arith.constant dense<0.000000e+00> : vector<2xf32>
      %22 = vector.multi_reduction <add>, %21, %cst_17 [1] : vector<2x32xf32> to vector<2xf32>
      %23 = vector.shape_cast %22 : vector<2xf32> to vector<2x1xf32>
      %cst_18 = arith.constant 1.000000e-24 : f32
      %24 = vector.broadcast %cst_18 : f32 to vector<2x1xf32>
      %25 = arith.maximumf %23, %24 : vector<2x1xf32>
      %26 = math.rsqrt %25 : vector<2x1xf32>
      %27 = vector.broadcast %26 : vector<2x1xf32> to vector<2x32xf32>
      %28 = arith.mulf %20, %27 : vector<2x32xf32>
      %29 = arith.truncf %28 : vector<2x32xf32> to vector<2x32xbf16>
      %c0_19 = arith.constant 0 : index
      %c0_20 = arith.constant 0 : index
      %30 = vector.load %arg6[%c0_19, %c0_20] : memref<2x32xbf16, #tpu.memory_space<vmem>>, vector<2x32xbf16>
      tpu.vector_store %arg6[%c0_19, %c0_20], %29 {strides = array<i32>} : memref<2x32xbf16, #tpu.memory_space<vmem>>, vector<2x32xbf16>,
    } else {
    }
    return
  }
  func.func @transform_0(%arg0: i32, %arg1: i32) -> (i32, i32) {
    %c0_i32 = arith.constant 0 : i32
    return %arg0, %arg1 : i32, i32
  }
  func.func @transform_1(%arg0: i32, %arg1: i32) -> (i32, i32) {
    %c0_i32 = arith.constant 0 : i32
    %c0_i32_0 = arith.constant 0 : i32
    return %arg0, %c0_i32 : i32, i32
  }
  func.func @transform_2(%arg0: i32, %arg1: i32) -> (i32, i32) {
    %c0_i32 = arith.constant 0 : i32
    %c0_i32_0 = arith.constant 0 : i32
    %c0_i32_1 = arith.constant 0 : i32
    return %c0_i32, %c0_i32_0 : i32, i32
  }
  func.func @transform_3(%arg0: i32, %arg1: i32) -> (i32, i32) {
    %c0_i32 = arith.constant 0 : i32
    return %arg0, %arg0 : i32, i32
  }
  func.func @transform_4(%arg0: i32, %arg1: i32) -> (i32, i32) {
    %c0_i32 = arith.constant 0 : i32
    %c0_i32_0 = arith.constant 0 : i32
    return %arg0, %c0_i32 : i32, i32
  }
}

</mosaic_0001>

<llo_original>
// kernel: tpu_custom_call.1
$region0: #{tpu_custom_call.1}
  #allocation0 [shape = 'u32[]', space=smem, size = 0x4, offset = 0x4, fixed_abs, tag = 'smem constant byte address 0x4 - core index']
  #allocation1 [shape = 'u32[144,128]{1,0:T(1,128)}', space=vmem, size = 0x12000, scoped, tag = 'internal scratch']
  #allocation2 [shape = 'f32[8,256]{1,0:T(8,128)}', space=vmem, size = 0x2000, scoped, tag = 'scratch operand']
  %s0 = inlined_call_operand.hbm [shape: f32[8,256], index: 0, kind: input, shape index: {}]
  %s1 = inlined_call_operand.hbm [shape: f32[8,32], index: 1, kind: input, shape index: {}]
  %s2 = inlined_call_operand.hbm [shape: f32[1,32], index: 2, kind: input, shape index: {}]
  %s3 = inlined_call_operand.hbm [shape: f32[2,8], index: 3, kind: input, shape index: {}]
  %s4 = inlined_call_operand.hbm [shape: bf16[2,32], index: 4, kind: output, shape index: {}]
  %s5 = sld [smem:[#allocation0]]
  $region50: #{tpu_custom_call.1} parent=0
    _
  %s7 = ssub.s32 1, %s5
  %s8 = scalar_select 0, %s7, %s5
  $region1: #{tpu_custom_call.1} parent=0
    #allocation3 [shape = 'u8[8192]{0}', space=vmem, size = 0x2000, scoped, tag = 'input window, operand 0, single buffered']
    #allocation4 [shape = 's32[1]{0}', space=sflag, size = 0x4, scoped, tag = 'scoped memory for tpu_custom_call.1']
    #allocation5 [shape = 's32[1]{0}', space=sflag, size = 0x4, scoped, tag = 'scoped memory for tpu_custom_call.1']
    #allocation6 [shape = 'u8[4096]{0}', space=vmem, size = 0x1000, scoped, tag = 'input window, operand 1, single buffered']
    #allocation7 [shape = 's32[1]{0}', space=sflag, size = 0x4, scoped, tag = 'scoped memory for tpu_custom_call.1']
    #allocation8 [shape = 'u8[512]{0}', space=vmem, size = 0x400, scoped, tag = 'input window, operand 2, single buffered']
    #allocation9 [shape = 'u8[1024]{0}', space=vmem, size = 0x400, scoped, tag = 'input window, operand 3, single buffered']
    #allocation10 [shape = 's32[1]{0}', space=sflag, size = 0x4, scoped, tag = 'scoped memory for tpu_custom_call.1']
    #allocation11 [shape = 'u8[512]{0}', space=vmem, size = 0x400, scoped, tag = 'output window, operand 0, single buffered']
    %9 = vsyncpa [#allocation4], 0
    %10 = vsyncpa [#allocation7], 0
    %11 = vsyncpa [#allocation10], 0
    %12 = vsyncpa [#allocation5], 0
    // Predicated region
    $region2: #{tpu_custom_call.1} parent=1 // pred_check
      _
    $region3: #{tpu_custom_call.1} parent=1 // pred_check_branch
      %14 = sbr.rel (0) target = $region5
    $region4: #{tpu_custom_call.1} parent=1 // pred_region
      %s16 = ssub.s32 256, 256
      %17 = vsyncadd [#allocation4], %s16
      %s19 = sshll.u32 [#allocation3], 4
      %s20 = int_to_ptr.vmem [resolvable:$true] %s19
      %22 = dma.hbm_to_vmem [thread:$0]  %s0, 256, %s20, [#allocation4]
    $region5: #{tpu_custom_call.1} parent=1 // pred_fallthru
      _
    // Predicated region
    $region6: #{tpu_custom_call.1} parent=1 // pred_check
      _
    $region7: #{tpu_custom_call.1} parent=1 // pred_check_branch
      %24 = sbr.rel (0) target = $region9
    $region8: #{tpu_custom_call.1} parent=1 // pred_region
      %s26 = ssub.s32 128, 128
      %27 = vsyncadd [#allocation7], %s26
      %s29 = sshll.u32 [#allocation6], 4
      %s30 = int_to_ptr.vmem [resolvable:$true] %s29
      %32 = dma.hbm_to_vmem [thread:$0]  %s1, 128, %s30, [#allocation7]
    $region9: #{tpu_custom_call.1} parent=1 // pred_fallthru
      _
    // Predicated region
    $region10: #{tpu_custom_call.1} parent=1 // pred_check
      _
    $region11: #{tpu_custom_call.1} parent=1 // pred_check_branch
      %34 = sbr.rel (0) target = $region13
    $region12: #{tpu_custom_call.1} parent=1 // pred_region
      %s36 = ssub.s32 16, 16
      %37 = vsyncadd [#allocation7], %s36
      %s39 = sshll.u32 [#allocation8], 4
      %s40 = int_to_ptr.vmem [resolvable:$true] %s39
      %42 = dma.hbm_to_vmem [thread:$0]  %s2, 16, %s40, [#allocation7]
    $region13: #{tpu_custom_call.1} parent=1 // pred_fallthru
      _
    // Predicated region
    $region14: #{tpu_custom_call.1} parent=1 // pred_check
      _
    $region15: #{tpu_custom_call.1} parent=1 // pred_check_branch
      %44 = sbr.rel (0) target = $region17
    $region16: #{tpu_custom_call.1} parent=1 // pred_region
      %s46 = ssub.s32 32, 32
      %47 = vsyncadd [#allocation10], %s46
      %s49 = sshll.u32 [#allocation9], 4
      %s50 = int_to_ptr.vmem [resolvable:$true] %s49
      %52 = dma.hbm_to_vmem [thread:$0]  %s3, 32, %s50, [#allocation10]
    $region17: #{tpu_custom_call.1} parent=1 // pred_fallthru
      _
    // Predicated region
    $region18: #{tpu_custom_call.1} parent=1 // pred_check
      _
    $region19: #{tpu_custom_call.1} parent=1 // pred_check_branch
      %54 = sbr.rel (0) target = $region21
    $region20: #{tpu_custom_call.1} parent=1 // pred_region
      %55 = dma.done [#allocation4], 256
    $region21: #{tpu_custom_call.1} parent=1 // pred_fallthru
      _
    // Predicated region
    $region22: #{tpu_custom_call.1} parent=1 // pred_check
      _
    $region23: #{tpu_custom_call.1} parent=1 // pred_check_branch
      %57 = sbr.rel (0) target = $region25
    $region24: #{tpu_custom_call.1} parent=1 // pred_region
      %58 = dma.done [#allocation7], 128
    $region25: #{tpu_custom_call.1} parent=1 // pred_fallthru
      _
    // Predicated region
    $region26: #{tpu_custom_call.1} parent=1 // pred_check
      _
    $region27: #{tpu_custom_call.1} parent=1 // pred_check_branch
      %60 = sbr.rel (0) target = $region29
    $region28: #{tpu_custom_call.1} parent=1 // pred_region
      %61 = dma.done [#allocation7], 16
    $region29: #{tpu_custom_call.1} parent=1 // pred_fallthru
      _
    // Predicated region
    $region30: #{tpu_custom_call.1} parent=1 // pred_check
      _
    $region31: #{tpu_custom_call.1} parent=1 // pred_check_branch
      %63 = sbr.rel (0) target = $region33
    $region32: #{tpu_custom_call.1} parent=1 // pred_region
      %64 = dma.done [#allocation10], 32
    $region33: #{tpu_custom_call.1} parent=1 // pred_fallthru
      _
    %p65 = scmp.eq.s32.totalorder 0, 0
    // Predicated region
    $region34: #{tpu_custom_call.1} parent=1 // pred_check
      %p66 = pneg %p65
    $region35: #{tpu_custom_call.1} parent=1 // pred_check_branch
      %68 = sbr.rel (%p66) target = $region37
    $region36: #{tpu_custom_call.1} parent=1 // pred_region
      %69 = vst [vmem:[#allocation2] sm:$0xff] 0.0
      %70 = vst [vmem:[#allocation2 + $0x8] sm:$0xff] 0.0
    $region37: #{tpu_custom_call.1} parent=1 // pred_fallthru
      _
    %v71 = vld [vmem:[#allocation3] sm:$0xff]
    %v72 = vld [vmem:[#allocation3 + $0x8] sm:$0xff]
    %v73 = vld [vmem:[#allocation2] sm:$0xff]
    %v74 = vld [vmem:[#allocation2 + $0x8] sm:$0xff]
    %v75 = vadd.f32 %v73, %v71
    %v76 = vadd.f32 %v74, %v72
    %77 = vst [vmem:[#allocation2] sm:$0xff] %v75
    %78 = vst [vmem:[#allocation2 + $0x8] sm:$0xff] %v76
    // Predicated region
    $region38: #{tpu_custom_call.1} parent=1 // pred_check
      %p79 = pneg %p65
    $region39: #{tpu_custom_call.1} parent=1 // pred_check_branch
      %81 = sbr.rel (%p79) target = $region41
    $region40: #{tpu_custom_call.1} parent=1 // pred_region
      %v82 = vld [vmem:[#allocation2] sm:$0xff]
      %v83 = vld [vmem:[#allocation2 + $0x8] sm:$0xff]
      %v84 = vadd.f32 %v82, %v83
      %85 = vadd.xlane.f32.xlu0 %v84
      %v86 = vpop.xlane.xlu0 %85
      %v87 = vld [vmem:[#allocation9] sm:$0x3]
      %v88 = vld [vmem:[#allocation6] sm:$0xff]
      %v89 = vmul.f32 %v86, %v88
      %v90 = vld [vmem:[#allocation8] sm:$0x1]
      %v92 = vlaneseq
      %v93 = vshrl.u32 %v92, 7
      %v94 = vsub.s32 0, %v93
      %v95 = vrot.slane %v90, %v94
      %vm97 = vcmask 64512
      %v99 = vsel %vm97, %v87, 0
      %101 = vmatprep.subr.mxu0 0.0
      %102 = vmatpush1.msra.mxu0 %v89
      %103 = vmatprep.subr.mxu0 0.0
      %104 = vmatpush1.msra.mxu0 0.0
      %105 = vmatprep.subr.mxu0 0.0
      %106 = vmatpush1.msra.mxu0 0.0
      %107 = vmatprep.subr.mxu0 0.0
      %108 = vmatpush1.msra.mxu0 0.0
      %109 = vmatprep.subr.mxu0 0.0
      %110 = vmatpush1.msra.mxu0 0.0
      %111 = vmatprep.subr.mxu0 0.0
      %112 = vmatpush1.msra.mxu0 0.0
      %113 = vmatprep.subr.mxu0 0.0
      %114 = vmatpush1.msra.mxu0 0.0
      %115 = vmatprep.subr.mxu0 0.0
      %116 = vmatpush1.msra.mxu0 0.0
      %117 = vmatprep.subr.mxu0 0.0
      %118 = vmatpush1.msra.mxu0 0.0
      %119 = vmatprep.subr.mxu0 0.0
      %120 = vmatpush1.msra.mxu0 0.0
      %121 = vmatprep.subr.mxu0 0.0
      %122 = vmatpush1.msra.mxu0 0.0
      %123 = vmatprep.subr.mxu0 0.0
      %124 = vmatpush1.msra.mxu0 0.0
      %125 = vmatprep.subr.mxu0 0.0
      %126 = vmatpush1.msra.mxu0 0.0
      %127 = vmatprep.subr.mxu0 0.0
      %128 = vmatpush1.msra.mxu0 0.0
      %129 = vmatprep.subr.mxu0 0.0
      %130 = vmatpush1.msra.mxu0 0.0
      %131 = vmatprep.subr.mxu0 0.0
      %132 = vmatpush1.msra.mxu0 0.0
      %133 = vmatprep.subr.mxu0 0.0
      %134 = vmatpush1.msra.mxu0 0.0
      %135 = vmatprep.subr.mxu0 0.0
      %136 = vmatpush1.msra.mxu0 0.0
      %137 = vmatprep.subr.mxu0 0.0
      %138 = vmatpush1.msra.mxu0 0.0
      %139 = vmatprep.subr.mxu0 0.0
      %140 = vmatpush1.msra.mxu0 0.0
      %141 = vmatprep.subr.mxu0 0.0
      %142 = vmatpush1.msra.mxu0 0.0
      %143 = vmatprep.subr.mxu0 0.0
      %144 = vmatpush1.msra.mxu0 0.0
      %145 = vmatprep.subr.mxu0 0.0
      %146 = vmatpush1.msra.mxu0 0.0
      %147 = vmatprep.subr.mxu0 0.0
      %148 = vmatpush1.msra.mxu0 0.0
      %149 = vmatprep.subr.mxu0 0.0
      %150 = vmatpush1.msra.mxu0 0.0
      %151 = vmatprep.subr.mxu0 0.0
      %152 = vmatpush1.msra.mxu0 0.0
      %153 = vmatprep.subr.mxu0 0.0
      %154 = vmatpush1.msra.mxu0 0.0
      %155 = vmatprep.subr.mxu0 0.0
      %156 = vmatpush1.msra.mxu0 0.0
      %157 = vmatprep.subr.mxu0 0.0
      %158 = vmatpush1.msra.mxu0 0.0
      %159 = vmatprep.subr.mxu0 0.0
      %160 = vmatpush1.msra.mxu0 0.0
      %161 = vmatprep.subr.mxu0 0.0
      %162 = vmatpush1.msra.mxu0 0.0
      %163 = vmatprep.subr.mxu0 0.0
      %164 = vmatpush1.msra.mxu0 0.0
      %165 = vmatprep.mubr.f32.mxu0 0.0
      %166 = vmatmul.mubr.f32.gmra.mrb[0].mxu0 %v99
      %v167 = vpop.f32.mrb[0].mxu0
      %v168 = vadd.f32 %v95, %v167
      %v169 = vpop.f32.mrb[0].mxu0
      %170 = vdwg.mxu0
      %v171 = vmul.f32 %v168, %v168
      %vm172 = vcmask 254976
      %v173 = vsel %vm172, %v171, 0.0
      %174 = vadd.xlane.f32.xlu0 %v173
      %v175 = vpop.xlane.xlu0 %174
      %v176 = vmax.f32 %v175, 1e-24
      %v177 = vrsqrt.pop %v176
      %v178 = vmul.f32 %v168, %v177
      %v179 = vpack.c.bf16 %v178, %v178
      %vm180 = vcmask 253952
      %181 = vst.msk [vmem:[#allocation11] sm:$0x1] %vm180, %v179
    $region41: #{tpu_custom_call.1} parent=1 // pred_fallthru
      _
    // Predicated region
    $region42: #{tpu_custom_call.1} parent=1 // pred_check
      _
    $region43: #{tpu_custom_call.1} parent=1 // pred_check_branch
      %183 = sbr.rel (0) target = $region45
    $region44: #{tpu_custom_call.1} parent=1 // pred_region
      %s185 = ssub.s32 16, 16
      %186 = vsyncadd [#allocation5], %s185
      %s188 = sshll.u32 [#allocation11], 4
      %s189 = int_to_ptr.vmem [resolvable:$true] %s188
      %191 = dma.vmem_to_hbm [thread:$0]  %s189, 16, %s4, [#allocation5]
    $region45: #{tpu_custom_call.1} parent=1 // pred_fallthru
      _
    // Predicated region
    $region46: #{tpu_custom_call.1} parent=1 // pred_check
      _
    $region47: #{tpu_custom_call.1} parent=1 // pred_check_branch
      %193 = sbr.rel (0) target = $region49
    $region48: #{tpu_custom_call.1} parent=1 // pred_region
      %194 = dma.done [#allocation5], 16
    $region49: #{tpu_custom_call.1} parent=1 // pred_fallthru
      _
    %195 = vsyncpa [#allocation4], 1
    %196 = vsyncpa [#allocation7], 1
    %197 = vsyncpa [#allocation10], 1
    %198 = vsyncpa [#allocation5], 1

</llo_original>
